<compile_context>
chip_gen: v6e
topology: v6e:2x2x1
jax: 0.10.0
libtpu: 0.0.40
codegen_flags: <defaults>
</compile_context>

<pallas_src>
import functools

import numpy as np
import jax
import jax.numpy as jnp
from jax import lax
from jax.experimental import pallas as pl
from jax.experimental.pallas import tpu as pltpu


def _round_up(x, m):
    return ((x + m - 1) // m) * m


# --------------------------------------------------------------------------
# __init__ equivalent: precompute the sinusoidal table (float64 math like the
# numpy code in the PyTorch module, cast to f32 like the assignment into the
# f32 zeros tensor), padded once to a lane-dense, tile-aligned layout.
# Returns (padded table, seq_tile, logical (S, D)).
# --------------------------------------------------------------------------
def make_positional_encoding(d_model, max_seq_length, *, per_buffer_bytes=4 << 20):
    S, D = max_seq_length, d_model
    pos = np.arange(S, dtype=np.float64)[:, None]
    i = np.arange(D, dtype=np.float64)[None, :]
    pe = pos / np.power(10000.0, 2.0 * i / D)
    pe[:, 0::2] = np.sin(pe[:, 0::2])
    pe[:, 1::2] = np.cos(pe[:, 1::2])
    pe = pe.astype(np.float32)

    # Lane-dense padding: d_model -> multiple of 128.
    D_pad = max(128, _round_up(D, 128))

    # Seq tile: biggest multiple of 8 within the per-buffer byte budget
    # (no hard row cap so per-grid-step bytes stay high for small d_model),
    # clamped to the (8-rounded) table length.
    ts = max(8, (per_buffer_bytes // (D_pad * 4)) // 8 * 8)
    ts = min(ts, _round_up(S, 8))
    S_pad = _round_up(S, ts)

    pe_padded = np.zeros((S_pad, D_pad), np.float32)
    pe_padded[:S, :D] = pe
    return jnp.asarray(pe_padded), ts, (S, D)


def _vmem_capacity_bytes():
    try:
        cap = getattr(pltpu.get_tpu_info(), "vmem_capacity_bytes", None)
        if cap:
            return int(cap)
    except Exception:
        pass
    return 64 << 20  # conservative fallback: v7x per-TensorCore VMEM


# --------------------------------------------------------------------------
# Pallas kernel: one (seq-tile, batch) grid step.
#   lengths_ref : (B,) int32 in SMEM (scalar prefetch)
#   pe_ref      : (ts, D_pad) f32 tile of the PE table
#   o_ref       : (ts, D_out) f32 output tile (batch dim squeezed)
# --------------------------------------------------------------------------
def _pos_embed_kernel(lengths_ref, pe_ref, o_ref, *, ts):
    s = pl.program_id(0)          # seq tile (outer, "parallel")
    b = pl.program_id(1)          # batch (inner, "arbitrary" -> PE DMA elided)
    seq_len = lengths_ref[b]      # scalar from SMEM
    tile_start = s * ts

    full_tile = seq_len >= tile_start + ts
    empty_tile = seq_len <= tile_start

    @pl.when(full_tile)
    def _():
        o_ref[...] = pe_ref[...]

    @pl.when(empty_tile)
    def _():
        o_ref[...] = jnp.zeros(o_ref.shape, o_ref.dtype)

    @pl.when(jnp.logical_and(jnp.logical_not(full_tile),
                             jnp.logical_not(empty_tile)))
    def _():
        row = tile_start + lax.broadcasted_iota(jnp.int32, (ts, 1), 0)
        o_ref[...] = jnp.where(row < seq_len, pe_ref[...],
                               jnp.zeros((), o_ref.dtype))


# --------------------------------------------------------------------------
# forward(batch_size, batch_length) equivalent.
# --------------------------------------------------------------------------
def positional_encoding_forward(batch_size, batch_length, pe_padded, seq_tile,
                                logical_shape):
    S, D = logical_shape
    S_pad, D_pad = pe_padded.shape
    ts = seq_tile

    # Per-batch sequence lengths: pad/truncate to batch_size, clamp to S
    # (the PyTorch slice `[:seq_length]` silently clamps).
    lengths = jnp.asarray(batch_length, dtype=jnp.int32).reshape(-1)
    n = lengths.shape[0]
    if n < batch_size:
        lengths = jnp.concatenate(
            [lengths, jnp.zeros((batch_size - n,), jnp.int32)])
    else:
        lengths = lengths[:batch_size]
    lengths = jnp.minimum(lengths, jnp.int32(S))
    # The PyTorch forward zips PE rows with batch_length, so batch indices
    # >= max_seq_length are never filled -> force their length to 0.
    lengths = jnp.where(
        jnp.arange(batch_size, dtype=jnp.int32) < jnp.int32(S), lengths, 0)

    # Write the logical output directly when d_model is lane-aligned.
    D_out = D if D % 128 == 0 else D_pad
    n_seq_tiles = pl.cdiv(S, ts)           # == S_pad // ts

    tile_bytes = ts * D_pad * 4
    # Generation-aware VMEM cap (64 MiB/TC on v7x, 128 MiB on v5e/v6e).
    vmem_limit = int(min(_vmem_capacity_bytes() - (8 << 20),
                         max(4 << 20, 8 * tile_bytes)))

    out_bytes = batch_size * S * D_out * 4
    table_bytes = S_pad * D_pad * 4

    out = pl.pallas_call(
        functools.partial(_pos_embed_kernel, ts=ts),
        out_shape=jax.ShapeDtypeStruct((batch_size, S, D_out), jnp.float32),
        grid_spec=pltpu.PrefetchScalarGridSpec(
            num_scalar_prefetch=1,
            grid=(n_seq_tiles, batch_size),
            in_specs=[
                # PE tile: depends only on the (outer) seq-tile index -> the DMA
                # is elided across the inner batch axis.
                pl.BlockSpec((ts, D_pad), lambda s, b, lens: (s, 0)),
            ],
            # Output tile: batch dim squeezed, lane-dense (ts, D_out) slab.
            out_specs=pl.BlockSpec((None, ts, D_out),
                                   lambda s, b, lens: (b, s, 0)),
        ),
        compiler_params=pltpu.CompilerParams(
            dimension_semantics=("parallel", "arbitrary"),
            vmem_limit_bytes=vmem_limit),
        cost_estimate=pl.CostEstimate(
            flops=0, transcendentals=0,
            bytes_accessed=out_bytes + table_bytes),   # one table read + one out write
    )(lengths, pe_padded)

    if D_out != D:
        # TODO(synk): this lane-slice materializes an extra HBM pass; a fused
        # consumer should read the lane-padded slab directly instead.
        out = out[:, :, :D]
    return out


# --------------------------------------------------------------------------
# Pure-JAX reference (same semantics as the PyTorch forward).
# --------------------------------------------------------------------------
def _reference(batch_size, batch_length, pe_table):
    S, D = pe_table.shape
    lengths = jnp.asarray(batch_length, jnp.int32).reshape(-1)[:batch_size]
    lengths = jnp.minimum(lengths, S)
    lengths = jnp.where(jnp.arange(batch_size) < S, lengths, 0)
    rows = jnp.arange(S, dtype=jnp.int32)[None, :, None]
    mask = rows < lengths[:, None, None]
    return jnp.where(mask, pe_table[None, :, :], 0.0).astype(jnp.float32)


if __name__ == "__main__":
    # Small shapes consistent with the module.
    d_model = 128
    max_seq_length = 64
    batch_size = 4

    key = jax.random.PRNGKey(0)
    batch_length = jax.random.randint(
        key, (batch_size,), minval=1, maxval=max_seq_length + 1, dtype=jnp.int32)

    pe_padded, seq_tile, logical_shape = make_positional_encoding(
        d_model, max_seq_length)

    out = positional_encoding_forward(
        batch_size, batch_length, pe_padded, seq_tile, logical_shape)
    out = jax.block_until_ready(out)

    S, D = logical_shape
    ref = _reference(batch_size, batch_length, pe_padded[:S, :D])
    assert out.shape == (batch_size, max_seq_length, d_model)
    assert jnp.allclose(out, ref, atol=1e-6, rtol=1e-6), "mismatch vs reference"

    print("KERNEL_OK")
</pallas_src>

<mosaic_0001>
module attributes {stable_mosaic.version = 11 : i64} {
  func.func @_pos_embed_kernel(%arg0: i32, %arg1: i32, %arg2: memref<4xi32, #tpu.memory_space<smem>>, %arg3: memref<64x128xf32, #tpu.memory_space<vmem>>, %arg4: memref<1x64x128xf32, #tpu.memory_space<vmem>>) attributes {dimension_semantics = [#tpu.dimension_semantics<parallel>, #tpu.dimension_semantics<arbitrary>], iteration_bounds = array<i64: 1, 4>, scalar_prefetch = 1 : i64, scratch_operands = 0 : i64, tpu.core_type = #tpu.core_type<tc>, window_params = [{transform_indices = @transform_0, window_bounds = array<i64: 64, 128>}, {transform_indices = @transform_1, window_bounds = array<i64: 1, 64, 128>}]} {
    %0 = arith.index_cast %arg1 : i32 to index
    %1 = memref.load %arg2[%0] : memref<4xi32, #tpu.memory_space<smem>>
    %c64_i32 = arith.constant 64 : i32
    %2 = arith.muli %arg0, %c64_i32 : i32
    %c64_i32_0 = arith.constant 64 : i32
    %3 = arith.addi %2, %c64_i32_0 : i32
    %4 = arith.cmpi sge, %1, %3 : i32
    %5 = arith.cmpi sle, %1, %2 : i32
    %6 = arith.extui %4 : i1 to i32
    %c0_i32 = arith.constant 0 : i32
    %7 = arith.cmpi ne, %6, %c0_i32 : i32
    scf.if %7 {
      %c0 = arith.constant 0 : index
      %c0_4 = arith.constant 0 : index
      %15 = vector.load %arg3[%c0, %c0_4] : memref<64x128xf32, #tpu.memory_space<vmem>>, vector<64x128xf32>
      %c0_5 = arith.constant 0 : index
      %c0_6 = arith.constant 0 : index
      %c0_7 = arith.constant 0 : index
      %16 = vector.load %arg4[%c0_5, %c0_6, %c0_7] : memref<1x64x128xf32, #tpu.memory_space<vmem>>, vector<1x64x128xf32>
      %17 = vector.shape_cast %16 : vector<1x64x128xf32> to vector<64x128xf32>
      %18 = vector.shape_cast %15 : vector<64x128xf32> to vector<1x64x128xf32>
      tpu.vector_store %arg4[%c0_5, %c0_6, %c0_7], %18 {strides = array<i32>} : memref<1x64x128xf32, #tpu.memory_space<vmem>>, vector<1x64x128xf32>,
    } else {
    }
    %8 = arith.extui %5 : i1 to i32
    %c0_i32_1 = arith.constant 0 : i32
    %9 = arith.cmpi ne, %8, %c0_i32_1 : i32
    scf.if %9 {
      %cst = arith.constant 0.000000e+00 : f32
      %15 = vector.broadcast %cst : f32 to vector<64x128xf32>
      %c0 = arith.constant 0 : index
      %c0_4 = arith.constant 0 : index
      %c0_5 = arith.constant 0 : index
      %16 = vector.load %arg4[%c0, %c0_4, %c0_5] : memref<1x64x128xf32, #tpu.memory_space<vmem>>, vector<1x64x128xf32>
      %17 = vector.shape_cast %16 : vector<1x64x128xf32> to vector<64x128xf32>
      %18 = vector.shape_cast %15 : vector<64x128xf32> to vector<1x64x128xf32>
      tpu.vector_store %arg4[%c0, %c0_4, %c0_5], %18 {strides = array<i32>} : memref<1x64x128xf32, #tpu.memory_space<vmem>>, vector<1x64x128xf32>,
    } else {
    }
    %true = arith.constant true
    %10 = arith.xori %4, %true : i1
    %true_2 = arith.constant true
    %11 = arith.xori %5, %true_2 : i1
    %12 = arith.andi %10, %11 : i1
    %13 = arith.extui %12 : i1 to i32
    %c0_i32_3 = arith.constant 0 : i32
    %14 = arith.cmpi ne, %13, %c0_i32_3 : i32
    scf.if %14 {
      %15 = tpu.iota {dimensions = array<i32: 0>} : vector<64x1xi32>
      %16 = vector.broadcast %2 : i32 to vector<64x1xi32>
      %17 = arith.addi %16, %15 : vector<64x1xi32>
      %18 = vector.broadcast %1 : i32 to vector<64x1xi32>
      %19 = arith.cmpi slt, %17, %18 : vector<64x1xi32>
      %c0 = arith.constant 0 : index
      %c0_4 = arith.constant 0 : index
      %20 = vector.load %arg3[%c0, %c0_4] : memref<64x128xf32, #tpu.memory_space<vmem>>, vector<64x128xf32>
      %cst = arith.constant 0.000000e+00 : f32
      %21 = vector.shape_cast %19 : vector<64x1xi1> to vector<64x1xi1>
      %22 = vector.broadcast %21 : vector<64x1xi1> to vector<64x128xi1>
      %23 = vector.broadcast %cst : f32 to vector<64x128xf32>
      %24 = arith.select %22, %20, %23 : vector<64x128xi1>, vector<64x128xf32>
      %c0_5 = arith.constant 0 : index
      %c0_6 = arith.constant 0 : index
      %c0_7 = arith.constant 0 : index
      %25 = vector.load %arg4[%c0_5, %c0_6, %c0_7] : memref<1x64x128xf32, #tpu.memory_space<vmem>>, vector<1x64x128xf32>
      %26 = vector.shape_cast %25 : vector<1x64x128xf32> to vector<64x128xf32>
      %27 = vector.shape_cast %24 : vector<64x128xf32> to vector<1x64x128xf32>
      tpu.vector_store %arg4[%c0_5, %c0_6, %c0_7], %27 {strides = array<i32>} : memref<1x64x128xf32, #tpu.memory_space<vmem>>, vector<1x64x128xf32>,
    } else {
    }
    return
  }
  func.func @transform_0(%arg0: i32, %arg1: i32, %arg2: memref<4xi32, #tpu.memory_space<smem>>) -> (i32, i32) {
    %c0_i32 = arith.constant 0 : i32
    %c0_i32_0 = arith.constant 0 : i32
    return %arg0, %c0_i32 : i32, i32
  }
  func.func @transform_1(%arg0: i32, %arg1: i32, %arg2: memref<4xi32, #tpu.memory_space<smem>>) -> (i32, i32, i32) {
    %c0_i32 = arith.constant 0 : i32
    %c0_i32_0 = arith.constant 0 : i32
    return %arg1, %arg0, %c0_i32 : i32, i32, i32
  }
}

</mosaic_0001>

<llo_original>
// kernel: tpu_custom_call.1
$region0: #{tpu_custom_call.1}
  #allocation0 [shape = 'u32[]', space=smem, size = 0x4, offset = 0x4, fixed_abs, tag = 'smem constant byte address 0x4 - core index']
  #allocation1 [shape = 'u32[144,128]{1,0:T(1,128)}', space=vmem, size = 0x12000, scoped, tag = 'internal scratch']
  #allocation2 [shape = 's32[1]{0}', space=sflag, size = 0x4, scoped, tag = 'scoped memory for tpu_custom_call.1']
  #allocation3 [shape = 'u8[512]{0}', space=smem, size = 0x200, scoped, tag = 'prefetched SMEM operand 0']
  %s0 = inlined_call_operand.hbm [shape: s32[4], index: 0, kind: input, shape index: {}]
  %s1 = inlined_call_operand.hbm [shape: f32[64,128], index: 1, kind: input, shape index: {}]
  %s2 = inlined_call_operand.hbm [shape: f32[4,64,128], index: 2, kind: output, shape index: {}]
  %s3 = sld [smem:[#allocation0]]
  $region53: #{tpu_custom_call.1} parent=0
    _
  %s5 = ssub.s32 1, %s3
  %s6 = scalar_select 0, %s5, %s3
  %8 = dma.hbm_to_smem %s0, 16, [#allocation3], [#allocation2]
  %9 = dma.done [#allocation2], 16
  %10 = sfence
  $region1: #{tpu_custom_call.1} parent=0
    #allocation4 [shape = 'u8[32768]{0}', space=vmem, size = 0x8000, scoped, tag = 'input window, operand 1, single buffered']
    #allocation5 [shape = 's32[2]{0}', space=sflag, size = 0x8, scoped, tag = 'scoped memory for tpu_custom_call.1']
    #allocation6 [shape = 's32[2]{0}', space=sflag, size = 0x8, scoped, tag = 'scoped memory for tpu_custom_call.1']
    #allocation7 [shape = 'u8[65536]{0}', space=vmem, size = 0x10000, scoped, tag = 'output window, operand 0']
    %11 = vsyncpa [#allocation5], 0
    %12 = vsyncpa [#allocation6], 0
    %s13 = scalar_lea.sflag [#allocation6], 1
    %14 = vsyncpa %s13, 0
    loop: start=0, step=1, limit=6
    $region2: #{tpu_custom_call.1} parent=1 // loop_pre_header
      _
    $region3: #{tpu_custom_call.1} parent=1 // loop_header
      %s16 = sphi 0, %s20
      %p17 = scmp.ge.s32.totalorder %s16, 6
      %s23 = sphi 0, %s35
      %s24 = sphi 0, %s31
      %s25 = sphi 0, %s23
      %s26 = sphi 0, %s24
      %s27 = sphi 0, %s25
      %s28 = sphi 0, %s26
      %s38 = sphi 0, %s40
      %s41 = sphi 0, %s38
      %s42 = sphi 0, %s41
      %s58 = sphi 0, %s42
      %s66 = sphi 0, %s68
      %s69 = sphi 0, %s66
      %s70 = sphi 0, %s69
      %s86 = sphi 0, %s70
    $region4: #{tpu_custom_call.1} parent=1 // loop_header_branch
      %19 = sbr.rel (%p17) target = $region8
    $region5: #{tpu_custom_call.1} parent=1 // loop_body
      %s21 = ssub.s32 %s16, 1
      %s22 = ssub.s32 %s16, 2
      %s29 = sadd.s32 1, %s24
      %p30 = scmp.ge.s32.totalorder %s29, 4
      %s31 = scalar_select %p30, 0, %s29
      %s32 = sadd.s32 1, %s23
      %s33 = scalar_select %p30, %s32, %s23
      %p34 = scmp.ge.s32.totalorder %s33, 1
      %s35 = scalar_select %p34, 0, %s33
      %s36 = ssub.s32 %s23, %s35
      %p37 = scmp.eq.s32.totalorder %s36, 0
      %s39 = sadd.s32 %s38, 1
      %s40 = scalar_select %p37, %s38, %s39
      %p43 = pneg %p37
      %p44 = scmp.eq.s32.totalorder %s16, 3
      %p45 = por %p43, %p44
      %p46 = scmp.ne.s32.totalorder %s38, %s41
      %p47 = scmp.eq.s32.totalorder %s16, 0
      %p48 = por %p46, %p47
      %p49 = scmp.ne.s32.totalorder %s38, %s41
      %p50 = scmp.eq.s32.totalorder %s21, 3
      %p51 = por %p49, %p50
      %p52 = scmp.ne.s32.totalorder %s41, %s42
      %p53 = scmp.eq.s32.totalorder %s21, 0
      %p54 = por %p52, %p53
      %p55 = scmp.ne.s32.totalorder %s41, %s42
      %p56 = scmp.eq.s32.totalorder %s22, 3
      %p57 = por %p55, %p56
      %p59 = scmp.ne.s32.totalorder %s42, %s58
      %p60 = scmp.eq.s32.totalorder %s22, 0
      %p61 = por %p59, %p60
      %s62 = ssub.s32 %s24, %s31
      %s63 = ssub.s32 %s23, %s35
      %s64 = sor.u32 %s62, %s63
      %p65 = scmp.eq.s32.totalorder %s64, 0
      %s67 = sadd.s32 %s66, 1
      %s68 = scalar_select %p65, %s66, %s67
      %p71 = pneg %p65
      %p72 = scmp.eq.s32.totalorder %s16, 3
      %p73 = por %p71, %p72
      %p74 = scmp.ne.s32.totalorder %s66, %s69
      %p75 = scmp.eq.s32.totalorder %s16, 0
      %p76 = por %p74, %p75
      %p77 = scmp.ne.s32.totalorder %s66, %s69
      %p78 = scmp.eq.s32.totalorder %s21, 3
      %p79 = por %p77, %p78
      %p80 = scmp.ne.s32.totalorder %s69, %s70
      %p81 = scmp.eq.s32.totalorder %s21, 0
      %p82 = por %p80, %p81
      %p83 = scmp.ne.s32.totalorder %s69, %s70
      %p84 = scmp.eq.s32.totalorder %s22, 3
      %p85 = por %p83, %p84
      %p87 = scmp.ne.s32.totalorder %s70, %s86
      %p88 = scmp.eq.s32.totalorder %s22, 0
      %p89 = por %p87, %p88
      %p90 = scmp.le.s32.totalorder 1, %s16
      %p91 = scmp.lt.s32.totalorder %s16, 5
      %p92 = pnand %p90, %p91
      %p93 = pneg %p92
      // Predicated region
      $region9: #{tpu_custom_call.1} parent=5 // pred_check
        _
      $region10: #{tpu_custom_call.1} parent=5 // pred_check_branch
        %95 = sbr.rel (%p92) target = $region12
      $region11: #{tpu_custom_call.1} parent=5 // pred_region
        %s96 = ssub.s32 %s16, 1
        // Predicated region
        $region13: #{tpu_custom_call.1} parent=11 // pred_check
          %p97 = pneg %p54
        $region14: #{tpu_custom_call.1} parent=11 // pred_check_branch
          %99 = sbr.rel (%p97) target = $region16
        $region15: #{tpu_custom_call.1} parent=11 // pred_region
          %s100 = smul.u32 8, %s25
          %s102 = ssub.s32 1024, 1024
          %103 = vsyncadd [#allocation5], %s102
          %s104 = smul.addr %s100, 128
          %s105 = scalar_lea.hbm %s1, %s104
          %s106 = sshll.u32 [#allocation4], 4
          %s107 = int_to_ptr.vmem [resolvable:$true] %s106
          %112 = dma.hbm_to_vmem [thread:$0]  %s105, 1024, %s107, [#allocation5], 128, 128, 8
        $region16: #{tpu_custom_call.1} parent=11 // pred_fallthru
          _
      $region12: #{tpu_custom_call.1} parent=5 // pred_fallthru
        _
      %p113 = scmp.lt.s32.totalorder %s16, 4
      // Predicated region
      $region17: #{tpu_custom_call.1} parent=5 // pred_check
        %p114 = pneg %p113
      $region18: #{tpu_custom_call.1} parent=5 // pred_check_branch
        %116 = sbr.rel (%p114) target = $region20
      $region19: #{tpu_custom_call.1} parent=5 // pred_region
        _
      $region20: #{tpu_custom_call.1} parent=5 // pred_fallthru
        _
      %p117 = scmp.le.s32.totalorder 1, %s16
      %p118 = scmp.lt.s32.totalorder %s16, 5
      %p119 = pnand %p117, %p118
      %p120 = pneg %p119
      // Predicated region
      $region21: #{tpu_custom_call.1} parent=5 // pred_check
        _
      $region22: #{tpu_custom_call.1} parent=5 // pred_check_branch
        %122 = sbr.rel (%p119) target = $region24
      $region23: #{tpu_custom_call.1} parent=5 // pred_region
        %s123 = ssub.s32 %s16, 1
        // Predicated region
        $region25: #{tpu_custom_call.1} parent=23 // pred_check
          %p124 = pneg %p54
        $region26: #{tpu_custom_call.1} parent=23 // pred_check_branch
          %126 = sbr.rel (%p124) target = $region28
        $region27: #{tpu_custom_call.1} parent=23 // pred_region
          %127 = dma.done [#allocation5], 1024
        $region28: #{tpu_custom_call.1} parent=23 // pred_fallthru
          _
        %p128 = pneg %p54
        %p129 = pneg %p51
        %p130 = pneg %p82
        %p131 = pneg %p79
        %s132 = sand.u32 %s69, 1
        %s133 = scalar_lea.sflag [#allocation6], %s132
        %s134 = sand.u32 %s69, 1
        %s135 = smul.addr %s134, 64
        %s136 = scalar_lea.vmem [#allocation7], %s135
        %s137 = smul.u32 8, %s25
        %s138 = smul.u32 8, %s25
        %s139 = sld [smem:[#allocation3 + %s26]]
        %s140 = smul.u32 %s25, 64
        %s141 = sadd.s32 %s140, 64
        %p142 = scmp.ge.s32.totalorder %s139, %s141
        %p143 = scmp.le.s32.totalorder %s139, %s140
        // Predicated region
        $region29: #{tpu_custom_call.1} parent=23 // pred_check
          %p144 = pneg %p142
        $region30: #{tpu_custom_call.1} parent=23 // pred_check_branch
          %146 = sbr.rel (%p144) target = $region32
        $region31: #{tpu_custom_call.1} parent=23 // pred_region
          %v147 = vld [vmem:[#allocation4] sm:$0xff]
          %v148 = vld [vmem:[#allocation4 + $0x8] sm:$0xff]
          %v149 = vld [vmem:[#allocation4 + $0x10] sm:$0xff]
          %v150 = vld [vmem:[#allocation4 + $0x18] sm:$0xff]
          %v151 = vld [vmem:[#allocation4 + $0x20] sm:$0xff]
          %v152 = vld [vmem:[#allocation4 + $0x28] sm:$0xff]
          %v153 = vld [vmem:[#allocation4 + $0x30] sm:$0xff]
          %v154 = vld [vmem:[#allocation4 + $0x38] sm:$0xff]
          %155 = vst [vmem:[%s136] sm:$0xff] %v147
          %156 = vst [vmem:[%s136 + $0x8] sm:$0xff] %v148
          %157 = vst [vmem:[%s136 + $0x10] sm:$0xff] %v149
          %158 = vst [vmem:[%s136 + $0x18] sm:$0xff] %v150
          %159 = vst [vmem:[%s136 + $0x20] sm:$0xff] %v151
          %160 = vst [vmem:[%s136 + $0x28] sm:$0xff] %v152
          %161 = vst [vmem:[%s136 + $0x30] sm:$0xff] %v153
          %162 = vst [vmem:[%s136 + $0x38] sm:$0xff] %v154
        $region32: #{tpu_custom_call.1} parent=23 // pred_fallthru
          _
        // Predicated region
        $region33: #{tpu_custom_call.1} parent=23 // pred_check
          %p163 = pneg %p143
        $region34: #{tpu_custom_call.1} parent=23 // pred_check_branch
          %165 = sbr.rel (%p163) target = $region36
        $region35: #{tpu_custom_call.1} parent=23 // pred_region
          %166 = vst [vmem:[%s136] sm:$0xff] 0.0
          %167 = vst [vmem:[%s136 + $0x8] sm:$0xff] 0.0
          %168 = vst [vmem:[%s136 + $0x10] sm:$0xff] 0.0
          %169 = vst [vmem:[%s136 + $0x18] sm:$0xff] 0.0
          %170 = vst [vmem:[%s136 + $0x20] sm:$0xff] 0.0
          %171 = vst [vmem:[%s136 + $0x28] sm:$0xff] 0.0
          %172 = vst [vmem:[%s136 + $0x30] sm:$0xff] 0.0
          %173 = vst [vmem:[%s136 + $0x38] sm:$0xff] 0.0
        $region36: #{tpu_custom_call.1} parent=23 // pred_fallthru
          _
        %p174 = scmp.lt.s32.totalorder %s139, %s141
        %p175 = scmp.gt.s32.totalorder %s139, %s140
        %p176 = pnand %p174, %p175
        %p177 = pneg %p176
        // Predicated region
        $region37: #{tpu_custom_call.1} parent=23 // pred_check
          _
        $region38: #{tpu_custom_call.1} parent=23 // pred_check_branch
          %179 = sbr.rel (%p176) target = $region40
        $region39: #{tpu_custom_call.1} parent=23 // pred_region
          %v180 = vlaneseq
          %v181 = vshrl.u32 %v180, 7
          %v182 = vadd.s32 %v181, 8
          %v183 = vadd.s32 %v181, 16
          %v184 = vadd.s32 %v181, 24
          %v185 = vadd.s32 %v181, 32
          %v186 = vadd.s32 %v181, 40
          %v187 = vadd.s32 %v181, 48
          %v188 = vadd.s32 %v181, 56
          %v189 = vstv %s140
          %v190 = vadd.s32 %v189, %v181
          %v191 = vadd.s32 %v189, %v182
          %v192 = vadd.s32 %v189, %v183
          %v193 = vadd.s32 %v189, %v184
          %v194 = vadd.s32 %v189, %v185
          %v195 = vadd.s32 %v189, %v186
          %v196 = vadd.s32 %v189, %v187
          %v197 = vadd.s32 %v189, %v188
          %v198 = vstv %s139
          %vm199 = vcmp.lt.s32.totalorder %v190, %v198
          %vm200 = vcmp.lt.s32.totalorder %v191, %v198
          %vm201 = vcmp.lt.s32.totalorder %v192, %v198
          %vm202 = vcmp.lt.s32.totalorder %v193, %v198
          %vm203 = vcmp.lt.s32.totalorder %v194, %v198
          %vm204 = vcmp.lt.s32.totalorder %v195, %v198
          %vm205 = vcmp.lt.s32.totalorder %v196, %v198
          %vm206 = vcmp.lt.s32.totalorder %v197, %v198
          %v207 = vld [vmem:[#allocation4] sm:$0xff]
          %v208 = vld [vmem:[#allocation4 + $0x8] sm:$0xff]
          %v209 = vld [vmem:[#allocation4 + $0x10] sm:$0xff]
          %v210 = vld [vmem:[#allocation4 + $0x18] sm:$0xff]
          %v211 = vld [vmem:[#allocation4 + $0x20] sm:$0xff]
          %v212 = vld [vmem:[#allocation4 + $0x28] sm:$0xff]
          %v213 = vld [vmem:[#allocation4 + $0x30] sm:$0xff]
          %v214 = vld [vmem:[#allocation4 + $0x38] sm:$0xff]
          %v215 = vsel %vm199, 1, 0
          %v216 = vsel %vm200, 1, 0
          %v217 = vsel %vm201, 1, 0
          %v218 = vsel %vm202, 1, 0
          %v219 = vsel %vm203, 1, 0
          %v220 = vsel %vm204, 1, 0
          %v221 = vsel %vm205, 1, 0
          %v222 = vsel %vm206, 1, 0
          %vm223 = vcmp.eq.s32.totalorder %v215, 1
          %vm224 = vcmp.eq.s32.totalorder %v216, 1
          %vm225 = vcmp.eq.s32.totalorder %v217, 1
          %vm226 = vcmp.eq.s32.totalorder %v218, 1
          %vm227 = vcmp.eq.s32.totalorder %v219, 1
          %vm228 = vcmp.eq.s32.totalorder %v220, 1
          %vm229 = vcmp.eq.s32.totalorder %v221, 1
          %vm230 = vcmp.eq.s32.totalorder %v222, 1
          %v231 = vsel %vm223, %v207, 0.0
          %v232 = vsel %vm224, %v208, 0.0
          %v233 = vsel %vm225, %v209, 0.0
          %v234 = vsel %vm226, %v210, 0.0
          %v235 = vsel %vm227, %v211, 0.0
          %v236 = vsel %vm228, %v212, 0.0
          %v237 = vsel %vm229, %v213, 0.0
          %v238 = vsel %vm230, %v214, 0.0
          %239 = vst [vmem:[%s136] sm:$0xff] %v231
          %240 = vst [vmem:[%s136 + $0x8] sm:$0xff] %v232
          %241 = vst [vmem:[%s136 + $0x10] sm:$0xff] %v233
          %242 = vst [vmem:[%s136 + $0x18] sm:$0xff] %v234
          %243 = vst [vmem:[%s136 + $0x20] sm:$0xff] %v235
          %244 = vst [vmem:[%s136 + $0x28] sm:$0xff] %v236
          %245 = vst [vmem:[%s136 + $0x30] sm:$0xff] %v237
          %246 = vst [vmem:[%s136 + $0x38] sm:$0xff] %v238
        $region40: #{tpu_custom_call.1} parent=23 // pred_fallthru
          _
        %s247 = sand.u32 %s69, 1
        %s248 = scalar_lea.sflag [#allocation6], %s247
        %s249 = sand.u32 %s69, 1
        %s250 = smul.addr %s249, 64
        %s251 = scalar_lea.vmem [#allocation7], %s250
        // Predicated region
        $region41: #{tpu_custom_call.1} parent=23 // pred_check
          %p252 = pneg %p79
        $region42: #{tpu_custom_call.1} parent=23 // pred_check_branch
          %254 = sbr.rel (%p252) target = $region44
        $region43: #{tpu_custom_call.1} parent=23 // pred_region
          %s255 = smul.u32 8, %s25
          %s257 = ssub.s32 1024, 1024
          %258 = vsyncadd %s248, %s257
          %s259 = smul.addr %s26, 8
          %s260 = sadd.s32 %s255, %s259
          %s261 = smul.addr %s260, 128
          %s262 = scalar_lea.hbm %s2, %s261
          %s263 = sshll.u32 %s251, 4
          %s264 = int_to_ptr.vmem [resolvable:$true] %s263
          %269 = dma.vmem_to_hbm [thread:$0]  %s264, 1024, %s262, %s248, 128, 128, 8
        $region44: #{tpu_custom_call.1} parent=23 // pred_fallthru
          _
      $region24: #{tpu_custom_call.1} parent=5 // pred_fallthru
        _
      %p270 = scmp.le.s32.totalorder 2, %s16
      // Predicated region
      $region45: #{tpu_custom_call.1} parent=5 // pred_check
        %p271 = pneg %p270
      $region46: #{tpu_custom_call.1} parent=5 // pred_check_branch
        %273 = sbr.rel (%p271) target = $region48
      $region47: #{tpu_custom_call.1} parent=5 // pred_region
        %s274 = ssub.s32 %s16, 2
        // Predicated region
        $region49: #{tpu_custom_call.1} parent=47 // pred_check
          %p275 = pneg %p85
        $region50: #{tpu_custom_call.1} parent=47 // pred_check_branch
          %277 = sbr.rel (%p275) target = $region52
        $region51: #{tpu_custom_call.1} parent=47 // pred_region
          %s278 = sand.u32 %s70, 1
          %s279 = scalar_lea.sflag [#allocation6], %s278
          %s280 = sand.u32 %s70, 1
          %s281 = smul.addr %s280, 64
          %s282 = scalar_lea.vmem [#allocation7], %s281
          %283 = dma.done %s279, 1024
        $region52: #{tpu_custom_call.1} parent=47 // pred_fallthru
          _
      $region48: #{tpu_custom_call.1} parent=5 // pred_fallthru
        _
    $region6: #{tpu_custom_call.1} parent=1 // loop_footer
      %s20 = sadd.s32 1, %s16
    $region7: #{tpu_custom_call.1} parent=1 // loop_footer_branch
      %15 = sbr.rel target = $region3
    $region8: #{tpu_custom_call.1} parent=1 // loop_exit
      _
    %284 = vsyncpa [#allocation5], 1
    %s285 = scalar_lea.sflag [#allocation5], 1
    %286 = vsyncpa %s285, 1
    %287 = vsyncpa [#allocation6], 1
    %s288 = scalar_lea.sflag [#allocation6], 1
    %289 = vsyncpa %s288, 1

</llo_original>
